<compile_context>
chip_gen: v7x
topology: tpu7x:2x2x1
jax: 0.10.0
libtpu: 0.0.40
codegen_flags: <defaults>
</compile_context>

<pallas_src>
import math
from functools import partial

import jax
import jax.numpy as jnp
from jax.experimental import pallas as pl
from jax.experimental.pallas import tpu as pltpu


def _ensemble_mlp_kernel(x_ref, w1f_ref, b1f_ref, w2bd_ref, b2f_ref,
                         w3bd_ref, b3f_ref, o_ref):
    # x_ref:    (TB, d_in)         batch tile (or full batch on gridless path)
    # w1f_ref:  (d_in, E*H1)       layer-1 weights fused across the ensemble
    # b1f_ref:  (1, E*H1)
    # w2bd_ref: (E*H1, E*H2)       block-diagonal layer-2 weights
    # b2f_ref:  (1, E*H2)
    # w3bd_ref: (E*H2, E*d_out)    block-diagonal layer-3 weights
    # b3f_ref:  (1, E*d_out)
    # o_ref:    (TB, E*d_out)      lane-dense output slab (member e in cols
    #                              [e*d_out, (e+1)*d_out))
    x = x_ref[...]

    # Layer 1: one wide matmul for all E members (x is shared across members).
    h1 = jnp.dot(x, w1f_ref[...], preferred_element_type=jnp.float32) + b1f_ref[...]
    h1 = jnp.maximum(h1, 0.0)                                   # (TB, E*H1)

    # Layer 2: block-diagonal matmul — equivalent to E independent member
    # matmuls, but lane-dense, no slicing/concat, single MXU stream.
    h2 = jnp.dot(h1, w2bd_ref[...], preferred_element_type=jnp.float32) + b2f_ref[...]
    h2 = jnp.maximum(h2, 0.0)                                   # (TB, E*H2)

    # Layer 3 (no output activation) + single contiguous store.
    y = jnp.dot(h2, w3bd_ref[...], preferred_element_type=jnp.float32) + b3f_ref[...]
    o_ref[...] = y.astype(o_ref.dtype)


def prepare_params(w1, b1, w2, b2, w3, b3):
    """Hoisted weight re-layout: run ONCE when parameters are created/updated,
    NOT on every forward call.

      W1 (E, d_in, H1) -> w1f  (d_in, E*H1)   column c = (e = c // H1, h = c % H1)
      W2 (E, H1, H2)   -> w2bd (E*H1, E*H2)   member e on diagonal block (e, e)
      W3 (E, H2, dO)   -> w3bd (E*H2, E*dO)   member e on diagonal block (e, e)
      biases           -> (1, E*H) matching the e-major column order
    """
    E, d_in, h1 = w1.shape
    _, _, h2 = w2.shape
    _, _, d_out = w3.shape

    w1f = jnp.transpose(w1, (1, 0, 2)).reshape(d_in, E * h1)
    b1f = b1.reshape(1, E * h1)

    eye = jnp.eye(E, dtype=w2.dtype)
    # [e, h1, e', h2] = eye[e, e'] * w2[e, h1, h2]  -> block-diagonal matrix.
    w2bd = (eye[:, None, :, None] * w2[:, :, None, :]).reshape(E * h1, E * h2)
    b2f = b2.reshape(1, E * h2)

    w3bd = (eye[:, None, :, None] * w3[:, :, None, :]).reshape(E * h2, E * d_out)
    b3f = b3.reshape(1, E * d_out)

    return dict(w1f=w1f, b1f=b1f, w2bd=w2bd, b2f=b2f, w3bd=w3bd, b3f=b3f)


@partial(jax.jit, static_argnames=("ensemble_size", "block_b"))
def ensemble_mlp_forward(x, params, ensemble_size, block_b=128):
    """x: (B, d_in) float32, params from prepare_params -> (E, B, d_out) float32."""
    B, d_in = x.shape
    E = ensemble_size
    eh1 = params["w1f"].shape[1]
    eh2 = params["w2bd"].shape[1]
    edo = params["w3bd"].shape[1]
    d_out = edo // E

    args = (x, params["w1f"], params["b1f"], params["w2bd"], params["b2f"],
            params["w3bd"], params["b3f"])

    if B <= block_b:
        # Tiny-B / latency-bound path: single invocation, everything resident
        # in VMEM (a few KiB here; < 1 MiB even at the default [256, 256]
        # hidden config), no grid-step overhead.
        vmem = pl.BlockSpec(memory_space=pltpu.MemorySpace.VMEM)
        out_flat = pl.pallas_call(
            _ensemble_mlp_kernel,
            out_shape=jax.ShapeDtypeStruct((B, edo), jnp.float32),
            in_specs=[vmem] * 7,
            out_specs=vmem,
        )(*args)
    else:
        # Large-B path: tile the batch axis.  Weights map to block (0, 0) at
        # every grid step -> they stay VMEM-resident (no re-DMA); x / output
        # tiles are pipelined.  "parallel" lets v7x shard steps across its two
        # TensorCores; VMEM use is O(block_b), safe under v7x's 64 MiB.
        tb = block_b
        resident = lambda shape: pl.BlockSpec(shape, lambda i: (0, 0))
        out_flat = pl.pallas_call(
            _ensemble_mlp_kernel,
            out_shape=jax.ShapeDtypeStruct((B, edo), jnp.float32),
            grid=(pl.cdiv(B, tb),),
            in_specs=[
                pl.BlockSpec((tb, d_in), lambda i: (i, 0)),
                resident((d_in, eh1)), resident((1, eh1)),
                resident((eh1, eh2)), resident((1, eh2)),
                resident((eh2, edo)), resident((1, edo)),
            ],
            out_specs=pl.BlockSpec((tb, edo), lambda i: (i, 0)),
            compiler_params=pltpu.CompilerParams(
                dimension_semantics=("parallel",)),
        )(*args)

    # (B, E*d_out) -> (E, B, d_out): pure layout plumbing outside the kernel.
    return jnp.transpose(out_flat.reshape(B, E, d_out), (1, 0, 2))


def _init_linear_ensemble(key, in_features, out_features, ensemble_size):
    """Deterministic init mirroring LinearEnsemble.reset_parameters:
    kaiming_uniform(a=sqrt(5)) on W^T == U(-1/sqrt(fan_in), 1/sqrt(fan_in)),
    same bound for the bias."""
    kw, kb = jax.random.split(key)
    bound = 1.0 / math.sqrt(in_features)
    w = jax.random.uniform(
        kw, (ensemble_size, in_features, out_features),
        minval=-bound, maxval=bound, dtype=jnp.float32)
    b = jax.random.uniform(
        kb, (ensemble_size, 1, out_features),
        minval=-bound, maxval=bound, dtype=jnp.float32)
    return w, b


def _reference_forward(x, w1, b1, w2, b2, w3, b3):
    """Pure-JAX reference (mirrors torch.baddbmm + ReLU chain)."""
    E = w1.shape[0]
    xe = jnp.broadcast_to(x[None], (E,) + x.shape)           # (E, B, d_in)
    h = jnp.maximum(jnp.einsum("ebi,eio->ebo", xe, w1) + b1, 0.0)
    h = jnp.maximum(jnp.einsum("ebi,eio->ebo", h, w2) + b2, 0.0)
    return jnp.einsum("ebi,eio->ebo", h, w3) + b3


if __name__ == "__main__":
    # Small shapes consistent with the module: (B, input_dim) -> (E, B, output_dim)
    E = 3
    B = 8
    input_dim = 16
    hidden_layers = [32, 32]
    output_dim = 8

    key = jax.random.PRNGKey(0)
    kx, k1, k2, k3 = jax.random.split(key, 4)

    x = jax.random.normal(kx, (B, input_dim), dtype=jnp.float32)
    w1, b1 = _init_linear_ensemble(k1, input_dim, hidden_layers[0], E)
    w2, b2 = _init_linear_ensemble(k2, hidden_layers[0], hidden_layers[1], E)
    w3, b3 = _init_linear_ensemble(k3, hidden_layers[1], output_dim, E)

    # Weight re-layout done once, outside the jitted forward path.
    params = prepare_params(w1, b1, w2, b2, w3, b3)
    params = jax.tree_util.tree_map(jax.block_until_ready, params)

    # --- tiny-B gridless path ---
    out = ensemble_mlp_forward(x, params, ensemble_size=E)
    out = jax.block_until_ready(out)
    ref = _reference_forward(x, w1, b1, w2, b2, w3, b3)
    assert out.shape == (E, B, output_dim), out.shape
    assert jnp.allclose(out, ref, atol=1e-5, rtol=1e-5), float(jnp.max(jnp.abs(out - ref)))

    # --- batch-tiled grid path (B > block_b) ---
    B_big = 512
    x_big = jax.random.normal(jax.random.PRNGKey(1), (B_big, input_dim), dtype=jnp.float32)
    out_big = ensemble_mlp_forward(x_big, params, ensemble_size=E, block_b=128)
    out_big = jax.block_until_ready(out_big)
    ref_big = _reference_forward(x_big, w1, b1, w2, b2, w3, b3)
    assert out_big.shape == (E, B_big, output_dim), out_big.shape
    assert jnp.allclose(out_big, ref_big, atol=1e-4, rtol=1e-4), \
        float(jnp.max(jnp.abs(out_big - ref_big)))

    print("KERNEL_OK")
</pallas_src>

<mosaic_0001>
module attributes {stable_mosaic.version = 11 : i64} {
  func.func @_ensemble_mlp_kernel(%arg0: memref<8x16xf32, #tpu.memory_space<vmem>>, %arg1: memref<16x96xf32, #tpu.memory_space<vmem>>, %arg2: memref<1x96xf32, #tpu.memory_space<vmem>>, %arg3: memref<96x96xf32, #tpu.memory_space<vmem>>, %arg4: memref<1x96xf32, #tpu.memory_space<vmem>>, %arg5: memref<96x24xf32, #tpu.memory_space<vmem>>, %arg6: memref<1x24xf32, #tpu.memory_space<vmem>>, %arg7: memref<8x24xf32, #tpu.memory_space<vmem>>) attributes {dimension_semantics = [], scalar_prefetch = 0 : i64, scratch_operands = 0 : i64, tpu.core_type = #tpu.core_type<tc>} {
    %c0 = arith.constant 0 : index
    %c0_0 = arith.constant 0 : index
    %0 = vector.load %arg0[%c0, %c0_0] : memref<8x16xf32, #tpu.memory_space<vmem>>, vector<8x16xf32>
    %c0_1 = arith.constant 0 : index
    %c0_2 = arith.constant 0 : index
    %1 = vector.load %arg1[%c0_1, %c0_2] : memref<16x96xf32, #tpu.memory_space<vmem>>, vector<16x96xf32>
    %cst = arith.constant dense<0.000000e+00> : vector<8x96xf32>
    %2 = tpu.matmul %0, %1, %cst {dimension_numbers = #tpu.dot_dimension_numbers<[1], [0], [0], [1], [0, 0, 1, 1], [], []>} : vector<8x16xf32>, vector<16x96xf32>, vector<8x96xf32> -> vector<8x96xf32>
    %c0_3 = arith.constant 0 : index
    %c0_4 = arith.constant 0 : index
    %3 = vector.load %arg2[%c0_3, %c0_4] : memref<1x96xf32, #tpu.memory_space<vmem>>, vector<1x96xf32>
    %4 = vector.broadcast %3 : vector<1x96xf32> to vector<8x96xf32>
    %5 = arith.addf %2, %4 : vector<8x96xf32>
    %cst_5 = arith.constant 0.000000e+00 : f32
    %6 = vector.broadcast %cst_5 : f32 to vector<8x96xf32>
    %7 = arith.maximumf %5, %6 : vector<8x96xf32>
    %c0_6 = arith.constant 0 : index
    %c0_7 = arith.constant 0 : index
    %8 = vector.load %arg3[%c0_6, %c0_7] : memref<96x96xf32, #tpu.memory_space<vmem>>, vector<96x96xf32>
    %cst_8 = arith.constant dense<0.000000e+00> : vector<8x96xf32>
    %9 = tpu.matmul %7, %8, %cst_8 {dimension_numbers = #tpu.dot_dimension_numbers<[1], [0], [0], [1], [0, 0, 1, 1], [], []>} : vector<8x96xf32>, vector<96x96xf32>, vector<8x96xf32> -> vector<8x96xf32>
    %c0_9 = arith.constant 0 : index
    %c0_10 = arith.constant 0 : index
    %10 = vector.load %arg4[%c0_9, %c0_10] : memref<1x96xf32, #tpu.memory_space<vmem>>, vector<1x96xf32>
    %11 = vector.broadcast %10 : vector<1x96xf32> to vector<8x96xf32>
    %12 = arith.addf %9, %11 : vector<8x96xf32>
    %cst_11 = arith.constant 0.000000e+00 : f32
    %13 = vector.broadcast %cst_11 : f32 to vector<8x96xf32>
    %14 = arith.maximumf %12, %13 : vector<8x96xf32>
    %c0_12 = arith.constant 0 : index
    %c0_13 = arith.constant 0 : index
    %15 = vector.load %arg5[%c0_12, %c0_13] : memref<96x24xf32, #tpu.memory_space<vmem>>, vector<96x24xf32>
    %cst_14 = arith.constant dense<0.000000e+00> : vector<8x24xf32>
    %16 = tpu.matmul %14, %15, %cst_14 {dimension_numbers = #tpu.dot_dimension_numbers<[1], [0], [0], [1], [0, 0, 1, 1], [], []>} : vector<8x96xf32>, vector<96x24xf32>, vector<8x24xf32> -> vector<8x24xf32>
    %c0_15 = arith.constant 0 : index
    %c0_16 = arith.constant 0 : index
    %17 = vector.load %arg6[%c0_15, %c0_16] : memref<1x24xf32, #tpu.memory_space<vmem>>, vector<1x24xf32>
    %18 = vector.broadcast %17 : vector<1x24xf32> to vector<8x24xf32>
    %19 = arith.addf %16, %18 : vector<8x24xf32>
    %c0_17 = arith.constant 0 : index
    %c0_18 = arith.constant 0 : index
    %20 = vector.load %arg7[%c0_17, %c0_18] : memref<8x24xf32, #tpu.memory_space<vmem>>, vector<8x24xf32>
    tpu.vector_store %arg7[%c0_17, %c0_18], %19 {strides = array<i32>} : memref<8x24xf32, #tpu.memory_space<vmem>>, vector<8x24xf32>,
    return
  }
}

</mosaic_0001>

<llo_original>
// kernel: ensemble_mlp_forward.1
$region0: #{ensemble_mlp_forward.1}
  #allocation0 [shape = 'u32[]', space=smem, size = 0x4, offset = 0x4, fixed_abs, tag = 'smem constant byte address 0x4 - core index']
  #allocation1 [shape = 'u32[144,128]{1,0:T(1,128)}', space=vmem, size = 0x12000, scoped, tag = 'internal scratch']
  %s0 = inlined_call_operand.vmem [shape: f32[8,16], index: 0, kind: input, shape index: {}]
  %s1 = inlined_call_operand.vmem [shape: f32[16,96], index: 1, kind: input, shape index: {}]
  %s2 = inlined_call_operand.vmem [shape: f32[1,96], index: 2, kind: input, shape index: {}]
  %s3 = inlined_call_operand.vmem [shape: f32[96,96], index: 3, kind: input, shape index: {}]
  %s4 = inlined_call_operand.vmem [shape: f32[1,96], index: 4, kind: input, shape index: {}]
  %s5 = inlined_call_operand.vmem [shape: f32[96,24], index: 5, kind: input, shape index: {}]
  %s6 = inlined_call_operand.vmem [shape: f32[1,24], index: 6, kind: input, shape index: {}]
  %s7 = inlined_call_operand.vmem [shape: f32[8,24], index: 7, kind: output, shape index: {}]
  %s8 = sld [smem:[#allocation0]]
  $region38: #{ensemble_mlp_forward.1} parent=0
    _
  %s10 = ssub.s32 1, %s8
  %s11 = scalar_select 0, %s10, %s8
  // Predicated region
  $region2: #{ensemble_mlp_forward.1} parent=0 // pred_check
    _
  $region3: #{ensemble_mlp_forward.1} parent=0 // pred_check_branch
    %13 = sbr.rel (0) target = $region5
  $region4: #{ensemble_mlp_forward.1} parent=0 // pred_region
    _
  $region5: #{ensemble_mlp_forward.1} parent=0 // pred_fallthru
    _
  // Predicated region
  $region6: #{ensemble_mlp_forward.1} parent=0 // pred_check
    _
  $region7: #{ensemble_mlp_forward.1} parent=0 // pred_check_branch
    %15 = sbr.rel (0) target = $region9
  $region8: #{ensemble_mlp_forward.1} parent=0 // pred_region
    _
  $region9: #{ensemble_mlp_forward.1} parent=0 // pred_fallthru
    _
  // Predicated region
  $region10: #{ensemble_mlp_forward.1} parent=0 // pred_check
    _
  $region11: #{ensemble_mlp_forward.1} parent=0 // pred_check_branch
    %17 = sbr.rel (0) target = $region13
  $region12: #{ensemble_mlp_forward.1} parent=0 // pred_region
    _
  $region13: #{ensemble_mlp_forward.1} parent=0 // pred_fallthru
    _
  // Predicated region
  $region14: #{ensemble_mlp_forward.1} parent=0 // pred_check
    _
  $region15: #{ensemble_mlp_forward.1} parent=0 // pred_check_branch
    %19 = sbr.rel (0) target = $region17
  $region16: #{ensemble_mlp_forward.1} parent=0 // pred_region
    _
  $region17: #{ensemble_mlp_forward.1} parent=0 // pred_fallthru
    _
  // Predicated region
  $region18: #{ensemble_mlp_forward.1} parent=0 // pred_check
    _
  $region19: #{ensemble_mlp_forward.1} parent=0 // pred_check_branch
    %21 = sbr.rel (0) target = $region21
  $region20: #{ensemble_mlp_forward.1} parent=0 // pred_region
    _
  $region21: #{ensemble_mlp_forward.1} parent=0 // pred_fallthru
    _
  // Predicated region
  $region22: #{ensemble_mlp_forward.1} parent=0 // pred_check
    _
  $region23: #{ensemble_mlp_forward.1} parent=0 // pred_check_branch
    %23 = sbr.rel (0) target = $region25
  $region24: #{ensemble_mlp_forward.1} parent=0 // pred_region
    _
  $region25: #{ensemble_mlp_forward.1} parent=0 // pred_fallthru
    _
  // Predicated region
  $region26: #{ensemble_mlp_forward.1} parent=0 // pred_check
    _
  $region27: #{ensemble_mlp_forward.1} parent=0 // pred_check_branch
    %25 = sbr.rel (0) target = $region29
  $region28: #{ensemble_mlp_forward.1} parent=0 // pred_region
    _
  $region29: #{ensemble_mlp_forward.1} parent=0 // pred_fallthru
    _
  %v26 = vld [vmem:[%s0] sm:$0xff]
  %v27 = vld [vmem:[%s1] sm:$0xff]
  %v28 = vld [vmem:[%s1 + $0x8] sm:$0xff]
  %v29 = vld [vmem:[%s2] sm:$0x1]
  %v31 = vlaneseq
  %v32 = vshrl.u32 %v31, 7
  %v33 = vsub.s32 0, %v32
  %v34 = vrot.slane %v29, %v33
  %vm36 = vcmask 130048
  %v38 = vsel %vm36, %v26, 0
  %40 = vmatprep.subr.mxu0 0.0
  %41 = vmatpush1.msra.mxu0 %v27
  %42 = vmatprep.subr.mxu0 0.0
  %43 = vmatpush1.msra.mxu0 %v28
  %44 = vmatprep.subr.mxu0 0.0
  %45 = vmatpush1.msra.mxu0 0.0
  %46 = vmatprep.subr.mxu0 0.0
  %47 = vmatpush1.msra.mxu0 0.0
  %48 = vmatprep.subr.mxu0 0.0
  %49 = vmatpush1.msra.mxu0 0.0
  %50 = vmatprep.subr.mxu0 0.0
  %51 = vmatpush1.msra.mxu0 0.0
  %52 = vmatprep.subr.mxu0 0.0
  %53 = vmatpush1.msra.mxu0 0.0
  %54 = vmatprep.subr.mxu0 0.0
  %55 = vmatpush1.msra.mxu0 0.0
  %56 = vmatprep.subr.mxu0 0.0
  %57 = vmatpush1.msra.mxu0 0.0
  %58 = vmatprep.subr.mxu0 0.0
  %59 = vmatpush1.msra.mxu0 0.0
  %60 = vmatprep.subr.mxu0 0.0
  %61 = vmatpush1.msra.mxu0 0.0
  %62 = vmatprep.subr.mxu0 0.0
  %63 = vmatpush1.msra.mxu0 0.0
  %64 = vmatprep.subr.mxu0 0.0
  %65 = vmatpush1.msra.mxu0 0.0
  %66 = vmatprep.subr.mxu0 0.0
  %67 = vmatpush1.msra.mxu0 0.0
  %68 = vmatprep.subr.mxu0 0.0
  %69 = vmatpush1.msra.mxu0 0.0
  %70 = vmatprep.subr.mxu0 0.0
  %71 = vmatpush1.msra.mxu0 0.0
  %72 = vmatprep.subr.mxu0 0.0
  %73 = vmatpush1.msra.mxu0 0.0
  %74 = vmatprep.subr.mxu0 0.0
  %75 = vmatpush1.msra.mxu0 0.0
  %76 = vmatprep.subr.mxu0 0.0
  %77 = vmatpush1.msra.mxu0 0.0
  %78 = vmatprep.subr.mxu0 0.0
  %79 = vmatpush1.msra.mxu0 0.0
  %80 = vmatprep.subr.mxu0 0.0
  %81 = vmatpush1.msra.mxu0 0.0
  %82 = vmatprep.subr.mxu0 0.0
  %83 = vmatpush1.msra.mxu0 0.0
  %84 = vmatprep.subr.mxu0 0.0
  %85 = vmatpush1.msra.mxu0 0.0
  %86 = vmatprep.subr.mxu0 0.0
  %87 = vmatpush1.msra.mxu0 0.0
  %88 = vmatprep.subr.mxu0 0.0
  %89 = vmatpush1.msra.mxu0 0.0
  %90 = vmatprep.subr.mxu0 0.0
  %91 = vmatpush1.msra.mxu0 0.0
  %92 = vmatprep.subr.mxu0 0.0
  %93 = vmatpush1.msra.mxu0 0.0
  %94 = vmatprep.subr.mxu0 0.0
  %95 = vmatpush1.msra.mxu0 0.0
  %96 = vmatprep.subr.mxu0 0.0
  %97 = vmatpush1.msra.mxu0 0.0
  %98 = vmatprep.subr.mxu0 0.0
  %99 = vmatpush1.msra.mxu0 0.0
  %100 = vmatprep.subr.mxu0 0.0
  %101 = vmatpush1.msra.mxu0 0.0
  %102 = vmatprep.subr.mxu0 0.0
  %103 = vmatpush1.msra.mxu0 0.0
  %104 = vmatprep.mubr.f32.mxu0 0.0
  %105 = vmatmul.mubr.f32.gmra.mrb[0].mxu0 %v38
  %v106 = vpop.f32.mrb[0].mxu0
  %v107 = vadd.f32 %v34, %v106
  %v108 = vpop.f32.mrb[0].mxu0
  %109 = vdwg.mxu0
  %v110 = vmax.f32 %v107, 0.0
  %v111 = vld [vmem:[%s3] sm:$0xff]
  %v112 = vld [vmem:[%s3 + $0x8] sm:$0xff]
  %v113 = vld [vmem:[%s3 + $0x10] sm:$0xff]
  %v114 = vld [vmem:[%s3 + $0x18] sm:$0xff]
  %v115 = vld [vmem:[%s3 + $0x20] sm:$0xff]
  %v116 = vld [vmem:[%s3 + $0x28] sm:$0xff]
  %v117 = vld [vmem:[%s3 + $0x30] sm:$0xff]
  %v118 = vld [vmem:[%s3 + $0x38] sm:$0xff]
  %v119 = vld [vmem:[%s3 + $0x40] sm:$0xff]
  %v120 = vld [vmem:[%s3 + $0x48] sm:$0xff]
  %v121 = vld [vmem:[%s3 + $0x50] sm:$0xff]
  %v122 = vld [vmem:[%s3 + $0x58] sm:$0xff]
  %v123 = vld [vmem:[%s4] sm:$0x1]
  %v125 = vlaneseq
  %v126 = vshrl.u32 %v125, 7
  %v127 = vsub.s32 0, %v126
  %v128 = vrot.slane %v123, %v127
  %vm130 = vcmask 785408
  %v132 = vsel %vm130, %v110, 0
  %134 = vmatprep.subr.mxu0 0.0
  %135 = vmatpush1.msra.mxu0 %v111
  %136 = vmatprep.subr.mxu0 0.0
  %137 = vmatpush1.msra.mxu0 %v112
  %138 = vmatprep.subr.mxu0 0.0
  %139 = vmatpush1.msra.mxu0 %v113
  %140 = vmatprep.subr.mxu0 0.0
  %141 = vmatpush1.msra.mxu0 %v114
  %142 = vmatprep.subr.mxu0 0.0
  %143 = vmatpush1.msra.mxu0 %v115
  %144 = vmatprep.subr.mxu0 0.0
  %145 = vmatpush1.msra.mxu0 %v116
  %146 = vmatprep.subr.mxu0 0.0
  %147 = vmatpush1.msra.mxu0 %v117
  %148 = vmatprep.subr.mxu0 0.0
  %149 = vmatpush1.msra.mxu0 %v118
  %150 = vmatprep.subr.mxu0 0.0
  %151 = vmatpush1.msra.mxu0 %v119
  %152 = vmatprep.subr.mxu0 0.0
  %153 = vmatpush1.msra.mxu0 %v120
  %154 = vmatprep.subr.mxu0 0.0
  %155 = vmatpush1.msra.mxu0 %v121
  %156 = vmatprep.subr.mxu0 0.0
  %157 = vmatpush1.msra.mxu0 %v122
  %158 = vmatprep.subr.mxu0 0.0
  %159 = vmatpush1.msra.mxu0 0.0
  %160 = vmatprep.subr.mxu0 0.0
  %161 = vmatpush1.msra.mxu0 0.0
  %162 = vmatprep.subr.mxu0 0.0
  %163 = vmatpush1.msra.mxu0 0.0
  %164 = vmatprep.subr.mxu0 0.0
  %165 = vmatpush1.msra.mxu0 0.0
  %166 = vmatprep.subr.mxu0 0.0
  %167 = vmatpush1.msra.mxu0 0.0
  %168 = vmatprep.subr.mxu0 0.0
  %169 = vmatpush1.msra.mxu0 0.0
  %170 = vmatprep.subr.mxu0 0.0
  %171 = vmatpush1.msra.mxu0 0.0
  %172 = vmatprep.subr.mxu0 0.0
  %173 = vmatpush1.msra.mxu0 0.0
  %174 = vmatprep.subr.mxu0 0.0
  %175 = vmatpush1.msra.mxu0 0.0
  %176 = vmatprep.subr.mxu0 0.0
  %177 = vmatpush1.msra.mxu0 0.0
  %178 = vmatprep.subr.mxu0 0.0
  %179 = vmatpush1.msra.mxu0 0.0
  %180 = vmatprep.subr.mxu0 0.0
  %181 = vmatpush1.msra.mxu0 0.0
  %182 = vmatprep.subr.mxu0 0.0
  %183 = vmatpush1.msra.mxu0 0.0
  %184 = vmatprep.subr.mxu0 0.0
  %185 = vmatpush1.msra.mxu0 0.0
  %186 = vmatprep.subr.mxu0 0.0
  %187 = vmatpush1.msra.mxu0 0.0
  %188 = vmatprep.subr.mxu0 0.0
  %189 = vmatpush1.msra.mxu0 0.0
  %190 = vmatprep.subr.mxu0 0.0
  %191 = vmatpush1.msra.mxu0 0.0
  %192 = vmatprep.subr.mxu0 0.0
  %193 = vmatpush1.msra.mxu0 0.0
  %194 = vmatprep.subr.mxu0 0.0
  %195 = vmatpush1.msra.mxu0 0.0
  %196 = vmatprep.subr.mxu0 0.0
  %197 = vmatpush1.msra.mxu0 0.0
  %198 = vmatprep.mubr.f32.mxu0 0.0
  %199 = vmatmul.mubr.f32.gmra.mrb[0].mxu0 %v132
  %v200 = vpop.f32.mrb[0].mxu0
  %v201 = vadd.f32 %v128, %v200
  %v202 = vpop.f32.mrb[0].mxu0
  %203 = vdwg.mxu0
  %v204 = vmax.f32 %v201, 0.0
  %v205 = vld [vmem:[%s5] sm:$0xff]
  %v206 = vld [vmem:[%s5 + $0x8] sm:$0xff]
  %v207 = vld [vmem:[%s5 + $0x10] sm:$0xff]
  %v208 = vld [vmem:[%s5 + $0x18] sm:$0xff]
  %v209 = vld [vmem:[%s5 + $0x20] sm:$0xff]
  %v210 = vld [vmem:[%s5 + $0x28] sm:$0xff]
  %v211 = vld [vmem:[%s5 + $0x30] sm:$0xff]
  %v212 = vld [vmem:[%s5 + $0x38] sm:$0xff]
  %v213 = vld [vmem:[%s5 + $0x40] sm:$0xff]
  %v214 = vld [vmem:[%s5 + $0x48] sm:$0xff]
  %v215 = vld [vmem:[%s5 + $0x50] sm:$0xff]
  %v216 = vld [vmem:[%s5 + $0x58] sm:$0xff]
  %v217 = vld [vmem:[%s6] sm:$0x1]
  %v219 = vlaneseq
  %v220 = vshrl.u32 %v219, 7
  %v221 = vsub.s32 0, %v220
  %v222 = vrot.slane %v217, %v221
  %v225 = vsel %vm130, %v204, 0
  %227 = vmatprep.subr.mxu0 0.0
  %228 = vmatpush1.msra.mxu0 %v205
  %229 = vmatprep.subr.mxu0 0.0
  %230 = vmatpush1.msra.mxu0 %v206
  %231 = vmatprep.subr.mxu0 0.0
  %232 = vmatpush1.msra.mxu0 %v207
  %233 = vmatprep.subr.mxu0 0.0
  %234 = vmatpush1.msra.mxu0 %v208
  %235 = vmatprep.subr.mxu0 0.0
  %236 = vmatpush1.msra.mxu0 %v209
  %237 = vmatprep.subr.mxu0 0.0
  %238 = vmatpush1.msra.mxu0 %v210
  %239 = vmatprep.subr.mxu0 0.0
  %240 = vmatpush1.msra.mxu0 %v211
  %241 = vmatprep.subr.mxu0 0.0
  %242 = vmatpush1.msra.mxu0 %v212
  %243 = vmatprep.subr.mxu0 0.0
  %244 = vmatpush1.msra.mxu0 %v213
  %245 = vmatprep.subr.mxu0 0.0
  %246 = vmatpush1.msra.mxu0 %v214
  %247 = vmatprep.subr.mxu0 0.0
  %248 = vmatpush1.msra.mxu0 %v215
  %249 = vmatprep.subr.mxu0 0.0
  %250 = vmatpush1.msra.mxu0 %v216
  %251 = vmatprep.subr.mxu0 0.0
  %252 = vmatpush1.msra.mxu0 0.0
  %253 = vmatprep.subr.mxu0 0.0
  %254 = vmatpush1.msra.mxu0 0.0
  %255 = vmatprep.subr.mxu0 0.0
  %256 = vmatpush1.msra.mxu0 0.0
  %257 = vmatprep.subr.mxu0 0.0
  %258 = vmatpush1.msra.mxu0 0.0
  %259 = vmatprep.subr.mxu0 0.0
  %260 = vmatpush1.msra.mxu0 0.0
  %261 = vmatprep.subr.mxu0 0.0
  %262 = vmatpush1.msra.mxu0 0.0
  %263 = vmatprep.subr.mxu0 0.0
  %264 = vmatpush1.msra.mxu0 0.0
  %265 = vmatprep.subr.mxu0 0.0
  %266 = vmatpush1.msra.mxu0 0.0
  %267 = vmatprep.subr.mxu0 0.0
  %268 = vmatpush1.msra.mxu0 0.0
  %269 = vmatprep.subr.mxu0 0.0
  %270 = vmatpush1.msra.mxu0 0.0
  %271 = vmatprep.subr.mxu0 0.0
  %272 = vmatpush1.msra.mxu0 0.0
  %273 = vmatprep.subr.mxu0 0.0
  %274 = vmatpush1.msra.mxu0 0.0
  %275 = vmatprep.subr.mxu0 0.0
  %276 = vmatpush1.msra.mxu0 0.0
  %277 = vmatprep.subr.mxu0 0.0
  %278 = vmatpush1.msra.mxu0 0.0
  %279 = vmatprep.subr.mxu0 0.0
  %280 = vmatpush1.msra.mxu0 0.0
  %281 = vmatprep.subr.mxu0 0.0
  %282 = vmatpush1.msra.mxu0 0.0
  %283 = vmatprep.subr.mxu0 0.0
  %284 = vmatpush1.msra.mxu0 0.0
  %285 = vmatprep.subr.mxu0 0.0
  %286 = vmatpush1.msra.mxu0 0.0
  %287 = vmatprep.subr.mxu0 0.0
  %288 = vmatpush1.msra.mxu0 0.0
  %289 = vmatprep.subr.mxu0 0.0
  %290 = vmatpush1.msra.mxu0 0.0
  %291 = vmatprep.mubr.f32.mxu0 0.0
  %292 = vmatmul.mubr.f32.gmra.mrb[0].mxu0 %v225
  %v293 = vpop.f32.mrb[0].mxu0
  %v294 = vadd.f32 %v222, %v293
  %v295 = vpop.f32.mrb[0].mxu0
  %296 = vdwg.mxu0
  %vm297 = vcmask 195584
  %298 = vst.msk [vmem:[%s7] sm:$0xff] %vm297, %v294
  // Predicated region
  $region30: #{ensemble_mlp_forward.1} parent=0 // pred_check
    _
  $region31: #{ensemble_mlp_forward.1} parent=0 // pred_check_branch
    %300 = sbr.rel (0) target = $region33
  $region32: #{ensemble_mlp_forward.1} parent=0 // pred_region
    _
  $region33: #{ensemble_mlp_forward.1} parent=0 // pred_fallthru
    _
  // Predicated region
  $region34: #{ensemble_mlp_forward.1} parent=0 // pred_check
    _
  $region35: #{ensemble_mlp_forward.1} parent=0 // pred_check_branch
    %302 = sbr.rel (0) target = $region37
  $region36: #{ensemble_mlp_forward.1} parent=0 // pred_region
    _
  $region37: #{ensemble_mlp_forward.1} parent=0 // pred_fallthru
    _

</llo_original>
